<compile_context>
chip_gen: v5e
topology: v5e:2x2
jax: 0.10.0
libtpu: 0.0.40
codegen_flags: <defaults>
</compile_context>

<pallas_src>
import jax
import jax.numpy as jnp
from jax.experimental import pallas as pl
from jax.experimental.pallas import tpu as pltpu

HIDDEN = 128                      # input / hidden width of CHead
N_DISC = 4
N_MU = 8
N_VAR = 8
N_FUSED = HIDDEN + N_MU + N_VAR   # 144: w1 | wmu | wvar packed along out-features


def _round_up(x, m):
    return ((x + m - 1) // m) * m


def chead_kernel(x_ref, wf_ref, bf_ref, w2_ref, b2_ref,
                 disc_ref, mu_ref, var_ref):
    # x tile is DMA'd as f32; cast to bf16 in-kernel (hidden under MXU/DMA).
    xb = x_ref[...].astype(jnp.bfloat16)                       # (tile, 128)

    # One fused x-facing matmul for all three heads, produced directly in
    # transposed ("features x batch") form so every output store is lane-dense:
    #   out1[f, b] = sum_k wf[f, k] * x[b, k]
    out1 = jax.lax.dot_general(
        wf_ref[...], xb,
        dimension_numbers=(((1,), (1,)), ((), ())),
        preferred_element_type=jnp.float32) + bf_ref[...]      # (144, tile) f32

    h = out1[0:HIDDEN, :]                                      # (128, tile)
    h = jnp.where(h > 0, h, 0.2 * h)                           # LeakyReLU(0.2), f32

    disc = jnp.dot(w2_ref[...], h.astype(jnp.bfloat16),
                   preferred_element_type=jnp.float32) + b2_ref[...]   # (4, tile)

    disc_ref[...] = disc
    mu_ref[...] = out1[HIDDEN:HIDDEN + N_MU, :]
    var_ref[...] = jnp.exp(out1[HIDDEN + N_MU:N_FUSED, :])     # exp on EUP, f32


def _choose_tile(padded_b, max_tile=2048):
    """padded_b is a multiple of 128.  Pick a lane-aligned batch tile, keeping
    >=2 grid steps when possible so the batch shards across both v7x TCs."""
    if padded_b <= 128:
        return padded_b
    best = 128
    t = 128
    while t <= min(max_tile, padded_b // 2):
        if padded_b % t == 0:
            best = t
        t += 128
    return best


def chead_forward(x, params, *, max_batch_tile=2048):
    """x: [B, 128] float32. Returns (disc_logits, mu, var) matching CHead.forward."""
    B, D = x.shape
    assert D == HIDDEN

    # Batch rides the lane axis of the outputs, so tiles are multiples of 128.
    # Padding (an extra copy of x) only happens when B itself is ragged.
    padded_B = _round_up(B, 128)
    if padded_B != B:
        x = jnp.pad(x, ((0, padded_B - B), (0, 0)))
    tile = _choose_tile(padded_B, max_batch_tile)
    grid = (padded_B // tile,)

    wf, bf = params["wf"], params["bf"]     # (144,128) bf16, (144,1) f32
    w2, b2 = params["w2"], params["b2"]     # (4,128)   bf16, (4,1)   f32

    flops = 2 * padded_B * HIDDEN * (N_FUSED + N_DISC)
    bytes_accessed = (padded_B * HIDDEN * 4                      # x (f32, one pass)
                      + 2 * HIDDEN * (N_FUSED + N_DISC)          # weights (bf16)
                      + 4 * (N_FUSED + N_DISC)                   # biases (f32)
                      + 4 * padded_B * (N_DISC + N_MU + N_VAR))  # outputs (f32)
    cost = pl.CostEstimate(flops=flops, transcendentals=padded_B * N_VAR,
                           bytes_accessed=bytes_accessed)

    def resident(arr):
        # Same (only) block every grid step -> stays VMEM-resident.
        return pl.BlockSpec(arr.shape, lambda i: (0, 0))

    disc_t, mu_t, var_t = pl.pallas_call(
        chead_kernel,
        out_shape=(
            jax.ShapeDtypeStruct((N_DISC, padded_B), jnp.float32),
            jax.ShapeDtypeStruct((N_MU, padded_B), jnp.float32),
            jax.ShapeDtypeStruct((N_VAR, padded_B), jnp.float32),
        ),
        grid_spec=pltpu.PrefetchScalarGridSpec(
            num_scalar_prefetch=0,
            grid=grid,
            in_specs=[
                pl.BlockSpec((tile, HIDDEN), lambda i: (i, 0)),   # x batch tile
                resident(wf), resident(bf),
                resident(w2), resident(b2),
            ],
            out_specs=[
                pl.BlockSpec((N_DISC, tile), lambda i: (0, i)),
                pl.BlockSpec((N_MU, tile), lambda i: (0, i)),
                pl.BlockSpec((N_VAR, tile), lambda i: (0, i)),
            ],
        ),
        compiler_params=pltpu.CompilerParams(
            dimension_semantics=("parallel",),
        ),
        cost_estimate=cost,
    )(x, wf, bf, w2, b2)

    disc = disc_t[:, :B].T
    mu = mu_t[:, :B].T
    var = var_t[:, :B].T
    # torch .squeeze() semantics (drops the batch dim only when B == 1).
    return jnp.squeeze(disc), jnp.squeeze(mu), jnp.squeeze(var)


def init_params(key):
    """Deterministic synthetic init matching nn.Linear shapes.  Weights kept in
    torch (out,in) layout and packed: wf = [w1; wmu; wvar] -> (144,128) bf16."""
    def linear(k, dout, din):
        kw, kb = jax.random.split(k)
        bound = 1.0 / (din ** 0.5)  # PyTorch default uniform scale
        w = jax.random.uniform(kw, (dout, din), jnp.float32, -bound, bound)
        b = jax.random.uniform(kb, (dout,), jnp.float32, -bound, bound)
        return w, b

    k1, k2, kmu, kvar = jax.random.split(key, 4)
    w1, b1 = linear(k1, HIDDEN, HIDDEN)
    w2, b2 = linear(k2, N_DISC, HIDDEN)
    wmu, bmu = linear(kmu, N_MU, HIDDEN)
    wvar, bvar = linear(kvar, N_VAR, HIDDEN)

    wf = jnp.concatenate([w1, wmu, wvar], axis=0)    # (144, 128)
    bf = jnp.concatenate([b1, bmu, bvar], axis=0)    # (144,)
    return {
        "wf": wf.astype(jnp.bfloat16),
        "bf": bf.reshape(N_FUSED, 1),
        "w2": w2.astype(jnp.bfloat16),
        "b2": b2.reshape(N_DISC, 1),
    }


def reference_forward(x, params):
    """Pure-JAX reference using the same bf16-operand / f32-accumulate math."""
    xb = x.astype(jnp.bfloat16)
    out1 = jax.lax.dot_general(
        xb, params["wf"], (((1,), (1,)), ((), ())),
        preferred_element_type=jnp.float32) + params["bf"][:, 0][None, :]
    h = out1[:, :HIDDEN]
    h = jnp.where(h > 0, h, 0.2 * h)
    disc = jax.lax.dot_general(
        h.astype(jnp.bfloat16), params["w2"], (((1,), (1,)), ((), ())),
        preferred_element_type=jnp.float32) + params["b2"][:, 0][None, :]
    mu = out1[:, HIDDEN:HIDDEN + N_MU]
    var = jnp.exp(out1[:, HIDDEN + N_MU:N_FUSED])
    return jnp.squeeze(disc), jnp.squeeze(mu), jnp.squeeze(var)


if __name__ == "__main__":
    key = jax.random.PRNGKey(0)
    key, kx = jax.random.split(key)

    B = 8  # small batch; wrapper pads internally to the 128-lane batch tile
    x = jax.random.normal(kx, (B, HIDDEN), jnp.float32)
    params = init_params(key)

    disc, mu, var = jax.block_until_ready(chead_forward(x, params))
    ref_disc, ref_mu, ref_var = reference_forward(x, params)

    assert disc.shape == (B, N_DISC) and mu.shape == (B, N_MU) and var.shape == (B, N_VAR)
    assert jnp.allclose(disc, ref_disc, atol=2e-3, rtol=2e-3), "disc mismatch"
    assert jnp.allclose(mu, ref_mu, atol=2e-3, rtol=2e-3), "mu mismatch"
    assert jnp.allclose(var, ref_var, atol=2e-3, rtol=2e-3), "var mismatch"

    print("KERNEL_OK")
</pallas_src>

<mosaic_0001>
module attributes {stable_mosaic.version = 11 : i64} {
  func.func @chead_kernel(%arg0: i32, %arg1: memref<128x128xf32, #tpu.memory_space<vmem>>, %arg2: memref<144x128xbf16, #tpu.memory_space<vmem>>, %arg3: memref<144x1xf32, #tpu.memory_space<vmem>>, %arg4: memref<4x128xbf16, #tpu.memory_space<vmem>>, %arg5: memref<4x1xf32, #tpu.memory_space<vmem>>, %arg6: memref<4x128xf32, #tpu.memory_space<vmem>>, %arg7: memref<8x128xf32, #tpu.memory_space<vmem>>, %arg8: memref<8x128xf32, #tpu.memory_space<vmem>>) attributes {dimension_semantics = [#tpu.dimension_semantics<parallel>], iteration_bounds = array<i64: 1>, scalar_prefetch = 0 : i64, scratch_operands = 0 : i64, tpu.core_type = #tpu.core_type<tc>, window_params = [{transform_indices = @transform_0, window_bounds = array<i64: 128, 128>}, {pipeline_mode = #tpu.pipeline_mode<synchronous>, transform_indices = @transform_1, window_bounds = array<i64: 144, 128>}, {pipeline_mode = #tpu.pipeline_mode<synchronous>, transform_indices = @transform_2, window_bounds = array<i64: 144, 1>}, {pipeline_mode = #tpu.pipeline_mode<synchronous>, transform_indices = @transform_3, window_bounds = array<i64: 4, 128>}, {pipeline_mode = #tpu.pipeline_mode<synchronous>, transform_indices = @transform_4, window_bounds = array<i64: 4, 1>}, {transform_indices = @transform_5, window_bounds = array<i64: 4, 128>}, {transform_indices = @transform_6, window_bounds = array<i64: 8, 128>}, {transform_indices = @transform_7, window_bounds = array<i64: 8, 128>}]} {
    %c0 = arith.constant 0 : index
    %c0_0 = arith.constant 0 : index
    %0 = vector.load %arg1[%c0, %c0_0] : memref<128x128xf32, #tpu.memory_space<vmem>>, vector<128x128xf32>
    %1 = arith.truncf %0 : vector<128x128xf32> to vector<128x128xbf16>
    %c0_1 = arith.constant 0 : index
    %c0_2 = arith.constant 0 : index
    %2 = vector.load %arg2[%c0_1, %c0_2] : memref<144x128xbf16, #tpu.memory_space<vmem>>, vector<144x128xbf16>
    %cst = arith.constant dense<0.000000e+00> : vector<144x128xf32>
    %3 = tpu.matmul %2, %1, %cst {dimension_numbers = #tpu.dot_dimension_numbers<[1], [1], [0], [0], [0, 0, 1, 0], [], []>} : vector<144x128xbf16>, vector<128x128xbf16>, vector<144x128xf32> -> vector<144x128xf32>
    %c0_3 = arith.constant 0 : index
    %c0_4 = arith.constant 0 : index
    %4 = vector.load %arg3[%c0_3, %c0_4] : memref<144x1xf32, #tpu.memory_space<vmem>>, vector<144x1xf32>
    %5 = vector.broadcast %4 : vector<144x1xf32> to vector<144x128xf32>
    %6 = arith.addf %3, %5 : vector<144x128xf32>
    %7 = vector.extract_strided_slice %6 {offsets = [0, 0], sizes = [128, 128], strides = [1, 1]} : vector<144x128xf32> to vector<128x128xf32>
    %cst_5 = arith.constant 0.000000e+00 : f32
    %8 = vector.broadcast %cst_5 : f32 to vector<128x128xf32>
    %9 = arith.cmpf ogt, %7, %8 : vector<128x128xf32>
    %cst_6 = arith.constant 2.000000e-01 : f32
    %10 = vector.broadcast %cst_6 : f32 to vector<128x128xf32>
    %11 = arith.mulf %10, %7 : vector<128x128xf32>
    %12 = arith.select %9, %7, %11 : vector<128x128xi1>, vector<128x128xf32>
    %c0_7 = arith.constant 0 : index
    %c0_8 = arith.constant 0 : index
    %13 = vector.load %arg4[%c0_7, %c0_8] : memref<4x128xbf16, #tpu.memory_space<vmem>>, vector<4x128xbf16>
    %14 = arith.truncf %12 : vector<128x128xf32> to vector<128x128xbf16>
    %cst_9 = arith.constant dense<0.000000e+00> : vector<4x128xf32>
    %15 = tpu.matmul %13, %14, %cst_9 {dimension_numbers = #tpu.dot_dimension_numbers<[1], [0], [0], [1], [0, 0, 1, 1], [], []>} : vector<4x128xbf16>, vector<128x128xbf16>, vector<4x128xf32> -> vector<4x128xf32>
    %c0_10 = arith.constant 0 : index
    %c0_11 = arith.constant 0 : index
    %16 = vector.load %arg5[%c0_10, %c0_11] : memref<4x1xf32, #tpu.memory_space<vmem>>, vector<4x1xf32>
    %17 = vector.broadcast %16 : vector<4x1xf32> to vector<4x128xf32>
    %18 = arith.addf %15, %17 : vector<4x128xf32>
    %c0_12 = arith.constant 0 : index
    %c0_13 = arith.constant 0 : index
    %19 = vector.load %arg6[%c0_12, %c0_13] : memref<4x128xf32, #tpu.memory_space<vmem>>, vector<4x128xf32>
    tpu.vector_store %arg6[%c0_12, %c0_13], %18 {strides = array<i32>} : memref<4x128xf32, #tpu.memory_space<vmem>>, vector<4x128xf32>,
    %20 = vector.extract_strided_slice %6 {offsets = [128, 0], sizes = [8, 128], strides = [1, 1]} : vector<144x128xf32> to vector<8x128xf32>
    %c0_14 = arith.constant 0 : index
    %c0_15 = arith.constant 0 : index
    %21 = vector.load %arg7[%c0_14, %c0_15] : memref<8x128xf32, #tpu.memory_space<vmem>>, vector<8x128xf32>
    tpu.vector_store %arg7[%c0_14, %c0_15], %20 {strides = array<i32>} : memref<8x128xf32, #tpu.memory_space<vmem>>, vector<8x128xf32>,
    %22 = vector.extract_strided_slice %6 {offsets = [136, 0], sizes = [8, 128], strides = [1, 1]} : vector<144x128xf32> to vector<8x128xf32>
    %23 = math.exp %22 : vector<8x128xf32>
    %c0_16 = arith.constant 0 : index
    %c0_17 = arith.constant 0 : index
    %24 = vector.load %arg8[%c0_16, %c0_17] : memref<8x128xf32, #tpu.memory_space<vmem>>, vector<8x128xf32>
    tpu.vector_store %arg8[%c0_16, %c0_17], %23 {strides = array<i32>} : memref<8x128xf32, #tpu.memory_space<vmem>>, vector<8x128xf32>,
    return
  }
  func.func @transform_0(%arg0: i32) -> (i32, i32) {
    %c0_i32 = arith.constant 0 : i32
    %c0_i32_0 = arith.constant 0 : i32
    return %arg0, %c0_i32 : i32, i32
  }
  func.func @transform_1(%arg0: i32) -> (i32, i32) {
    %c0_i32 = arith.constant 0 : i32
    %c0_i32_0 = arith.constant 0 : i32
    %c0_i32_1 = arith.constant 0 : i32
    return %c0_i32, %c0_i32_0 : i32, i32
  }
  func.func @transform_2(%arg0: i32) -> (i32, i32) {
    %c0_i32 = arith.constant 0 : i32
    %c0_i32_0 = arith.constant 0 : i32
    %c0_i32_1 = arith.constant 0 : i32
    return %c0_i32, %c0_i32_0 : i32, i32
  }
  func.func @transform_3(%arg0: i32) -> (i32, i32) {
    %c0_i32 = arith.constant 0 : i32
    %c0_i32_0 = arith.constant 0 : i32
    %c0_i32_1 = arith.constant 0 : i32
    return %c0_i32, %c0_i32_0 : i32, i32
  }
  func.func @transform_4(%arg0: i32) -> (i32, i32) {
    %c0_i32 = arith.constant 0 : i32
    %c0_i32_0 = arith.constant 0 : i32
    %c0_i32_1 = arith.constant 0 : i32
    return %c0_i32, %c0_i32_0 : i32, i32
  }
  func.func @transform_5(%arg0: i32) -> (i32, i32) {
    %c0_i32 = arith.constant 0 : i32
    %c0_i32_0 = arith.constant 0 : i32
    return %c0_i32, %arg0 : i32, i32
  }
  func.func @transform_6(%arg0: i32) -> (i32, i32) {
    %c0_i32 = arith.constant 0 : i32
    %c0_i32_0 = arith.constant 0 : i32
    return %c0_i32, %arg0 : i32, i32
  }
  func.func @transform_7(%arg0: i32) -> (i32, i32) {
    %c0_i32 = arith.constant 0 : i32
    %c0_i32_0 = arith.constant 0 : i32
    return %c0_i32, %arg0 : i32, i32
  }
}

</mosaic_0001>

<llo_original>
// kernel: tpu_custom_call.1
$region0: #{tpu_custom_call.1}
  #allocation0 [shape = 'u32[]', space=smem, size = 0x4, offset = 0x4, fixed_abs, tag = 'smem constant byte address 0x4 - core index']
  #allocation1 [shape = 'u32[72,128]{1,0:T(1,128)}', space=vmem, size = 0x9000, scoped, tag = 'internal scratch']
  %s0 = inlined_call_operand.vmem [shape: f32[128,128], index: 0, kind: input, shape index: {}]
  %s1 = inlined_call_operand.hbm [shape: bf16[144,128], index: 1, kind: input, shape index: {}]
  %s2 = inlined_call_operand.vmem [shape: f32[144,1], index: 2, kind: input, shape index: {}]
  %s3 = inlined_call_operand.vmem [shape: bf16[4,128], index: 3, kind: input, shape index: {}]
  %s4 = inlined_call_operand.vmem [shape: f32[4,1], index: 4, kind: input, shape index: {}]
  %s5 = inlined_call_operand.hbm [shape: f32[4,128], index: 5, kind: output, shape index: {0}]
  %s6 = inlined_call_operand.hbm [shape: f32[8,128], index: 6, kind: output, shape index: {1}]
  %s7 = inlined_call_operand.hbm [shape: f32[8,128], index: 7, kind: output, shape index: {2}]
  %8 = xla_tuple %s5, %s6, %s7
  %s9 = sld [smem:[#allocation0]]
  $region50: #{tpu_custom_call.1} parent=0
    _
  %s11 = ssub.s32 1, %s9
  %s12 = scalar_select 0, %s11, %s9
  $region1: #{tpu_custom_call.1} parent=0
    #allocation2 [shape = 'u8[36864]{0}', space=vmem, size = 0x9000, scoped, tag = 'input window, operand 1, single buffered']
    #allocation3 [shape = 's32[1]{0}', space=sflag, size = 0x4, scoped, tag = 'scoped memory for tpu_custom_call.1']
    #allocation4 [shape = 's32[1]{0}', space=sflag, size = 0x4, scoped, tag = 'scoped memory for tpu_custom_call.1']
    #allocation5 [shape = 'u8[2048]{0}', space=vmem, size = 0x800, scoped, tag = 'output window, operand 0, single buffered']
    #allocation6 [shape = 'u8[4096]{0}', space=vmem, size = 0x1000, scoped, tag = 'output window, operand 1, single buffered']
    #allocation7 [shape = 's32[1]{0}', space=sflag, size = 0x4, scoped, tag = 'scoped memory for tpu_custom_call.1']
    #allocation8 [shape = 'u8[4096]{0}', space=vmem, size = 0x1000, scoped, tag = 'output window, operand 2, single buffered']
    %13 = vsyncpa [#allocation3], 0
    %14 = vsyncpa [#allocation4], 0
    %15 = vsyncpa [#allocation7], 0
    // Predicated region
    $region2: #{tpu_custom_call.1} parent=1 // pred_check
      _
    $region3: #{tpu_custom_call.1} parent=1 // pred_check_branch
      %17 = sbr.rel (0) target = $region5
    $region4: #{tpu_custom_call.1} parent=1 // pred_region
      _
    $region5: #{tpu_custom_call.1} parent=1 // pred_fallthru
      _
    // Predicated region
    $region6: #{tpu_custom_call.1} parent=1 // pred_check
      _
    $region7: #{tpu_custom_call.1} parent=1 // pred_check_branch
      %19 = sbr.rel (0) target = $region9
    $region8: #{tpu_custom_call.1} parent=1 // pred_region
      %21 = vsyncadd [#allocation3], 0
      %s22 = sshll.u32 %s1, 4
      %s23 = int_to_ptr.hbm [resolvable:$true] %s22
      %s24 = sshll.u32 [#allocation2], 4
      %s25 = int_to_ptr.vmem [resolvable:$true] %s24
      %30 = dma.hbm_to_vmem [thread:$0]  %s23, 1152, %s25, [#allocation3], 64, 64, 4
    $region9: #{tpu_custom_call.1} parent=1 // pred_fallthru
      _
    // Predicated region
    $region10: #{tpu_custom_call.1} parent=1 // pred_check
      _
    $region11: #{tpu_custom_call.1} parent=1 // pred_check_branch
      %32 = sbr.rel (0) target = $region13
    $region12: #{tpu_custom_call.1} parent=1 // pred_region
      _
    $region13: #{tpu_custom_call.1} parent=1 // pred_fallthru
      _
    // Predicated region
    $region14: #{tpu_custom_call.1} parent=1 // pred_check
      _
    $region15: #{tpu_custom_call.1} parent=1 // pred_check_branch
      %34 = sbr.rel (0) target = $region17
    $region16: #{tpu_custom_call.1} parent=1 // pred_region
      _
    $region17: #{tpu_custom_call.1} parent=1 // pred_fallthru
      _
    // Predicated region
    $region18: #{tpu_custom_call.1} parent=1 // pred_check
      _
    $region19: #{tpu_custom_call.1} parent=1 // pred_check_branch
      %36 = sbr.rel (0) target = $region21
    $region20: #{tpu_custom_call.1} parent=1 // pred_region
      _
    $region21: #{tpu_custom_call.1} parent=1 // pred_fallthru
      _
    // Predicated region
    $region22: #{tpu_custom_call.1} parent=1 // pred_check
      _
    $region23: #{tpu_custom_call.1} parent=1 // pred_check_branch
      %38 = sbr.rel (0) target = $region25
    $region24: #{tpu_custom_call.1} parent=1 // pred_region
      %40 = dma.done [#allocation3], 1152
    $region25: #{tpu_custom_call.1} parent=1 // pred_fallthru
      _
    %v41 = vld [vmem:[%s0] sm:$0xff]
    %v42 = vld [vmem:[%s0 + $0x8] sm:$0xff]
    %v43 = vld [vmem:[%s0 + $0x10] sm:$0xff]
    %v44 = vld [vmem:[%s0 + $0x18] sm:$0xff]
    %v45 = vld [vmem:[%s0 + $0x20] sm:$0xff]
    %v46 = vld [vmem:[%s0 + $0x28] sm:$0xff]
    %v47 = vld [vmem:[%s0 + $0x30] sm:$0xff]
    %v48 = vld [vmem:[%s0 + $0x38] sm:$0xff]
    %v49 = vld [vmem:[%s0 + $0x40] sm:$0xff]
    %v50 = vld [vmem:[%s0 + $0x48] sm:$0xff]
    %v51 = vld [vmem:[%s0 + $0x50] sm:$0xff]
    %v52 = vld [vmem:[%s0 + $0x58] sm:$0xff]
    %v53 = vld [vmem:[%s0 + $0x60] sm:$0xff]
    %v54 = vld [vmem:[%s0 + $0x68] sm:$0xff]
    %v55 = vld [vmem:[%s0 + $0x70] sm:$0xff]
    %v56 = vld [vmem:[%s0 + $0x78] sm:$0xff]
    %v57 = vpack.c.bf16 %v42, %v41
    %v58 = vpack.c.bf16 %v44, %v43
    %v59 = vpack.c.bf16 %v46, %v45
    %v60 = vpack.c.bf16 %v48, %v47
    %v61 = vpack.c.bf16 %v50, %v49
    %v62 = vpack.c.bf16 %v52, %v51
    %v63 = vpack.c.bf16 %v54, %v53
    %v64 = vpack.c.bf16 %v56, %v55
    %v65 = vld [vmem:[#allocation2] sm:$0xf]
    %v66 = vld [vmem:[#allocation2 + $0x4] sm:$0xf]
    %v67 = vld [vmem:[#allocation2 + $0x8] sm:$0xf]
    %v68 = vld [vmem:[#allocation2 + $0xc] sm:$0xf]
    %v69 = vld [vmem:[#allocation2 + $0x10] sm:$0xf]
    %v70 = vld [vmem:[#allocation2 + $0x14] sm:$0xf]
    %v71 = vld [vmem:[#allocation2 + $0x18] sm:$0xf]
    %v72 = vld [vmem:[#allocation2 + $0x1c] sm:$0xf]
    %v73 = vld [vmem:[#allocation2 + $0x20] sm:$0xf]
    %v74 = vld [vmem:[#allocation2 + $0x24] sm:$0xf]
    %v75 = vld [vmem:[#allocation2 + $0x28] sm:$0xf]
    %v76 = vld [vmem:[#allocation2 + $0x2c] sm:$0xf]
    %v77 = vld [vmem:[#allocation2 + $0x30] sm:$0xf]
    %v78 = vld [vmem:[#allocation2 + $0x34] sm:$0xf]
    %v79 = vld [vmem:[#allocation2 + $0x38] sm:$0xf]
    %v80 = vld [vmem:[#allocation2 + $0x3c] sm:$0xf]
    %v81 = vld [vmem:[#allocation2 + $0x40] sm:$0xf]
    %v82 = vld [vmem:[#allocation2 + $0x44] sm:$0xf]
    %v83 = vld [vmem:[%s2] sm:$0xff]
    %v84 = vld [vmem:[%s2 + $0x8] sm:$0xff]
    %v85 = vld [vmem:[%s2 + $0x10] sm:$0xff]
    %v86 = vld [vmem:[%s2 + $0x18] sm:$0xff]
    %v87 = vld [vmem:[%s2 + $0x20] sm:$0xff]
    %v88 = vld [vmem:[%s2 + $0x28] sm:$0xff]
    %v89 = vld [vmem:[%s2 + $0x30] sm:$0xff]
    %v90 = vld [vmem:[%s2 + $0x38] sm:$0xff]
    %v91 = vld [vmem:[%s2 + $0x40] sm:$0xff]
    %v92 = vld [vmem:[%s2 + $0x48] sm:$0xff]
    %v93 = vld [vmem:[%s2 + $0x50] sm:$0xff]
    %v94 = vld [vmem:[%s2 + $0x58] sm:$0xff]
    %v95 = vld [vmem:[%s2 + $0x60] sm:$0xff]
    %v96 = vld [vmem:[%s2 + $0x68] sm:$0xff]
    %v97 = vld [vmem:[%s2 + $0x70] sm:$0xff]
    %v98 = vld [vmem:[%s2 + $0x78] sm:$0xff]
    %v99 = vld [vmem:[%s2 + $0x80] sm:$0xff]
    %v100 = vld [vmem:[%s2 + $0x88] sm:$0xff]
    %102 = vset.pattern.permute.xlu0 0
    %103 = vperm.xlu0 %102, %v83
    %v104 = vpop.permute.xlu0 %103
    %107 = vset.pattern.permute.xlu0 0
    %108 = vperm.xlu0 %107, %v84
    %v109 = vpop.permute.xlu0 %108
    %112 = vset.pattern.permute.xlu0 0
    %113 = vperm.xlu0 %112, %v85
    %v114 = vpop.permute.xlu0 %113
    %117 = vset.pattern.permute.xlu0 0
    %118 = vperm.xlu0 %117, %v86
    %v119 = vpop.permute.xlu0 %118
    %122 = vset.pattern.permute.xlu0 0
    %123 = vperm.xlu0 %122, %v87
    %v124 = vpop.permute.xlu0 %123
    %127 = vset.pattern.permute.xlu0 0
    %128 = vperm.xlu0 %127, %v88
    %v129 = vpop.permute.xlu0 %128
    %132 = vset.pattern.permute.xlu0 0
    %133 = vperm.xlu0 %132, %v89
    %v134 = vpop.permute.xlu0 %133
    %137 = vset.pattern.permute.xlu0 0
    %138 = vperm.xlu0 %137, %v90
    %v139 = vpop.permute.xlu0 %138
    %142 = vset.pattern.permute.xlu0 0
    %143 = vperm.xlu0 %142, %v91
    %v144 = vpop.permute.xlu0 %143
    %147 = vset.pattern.permute.xlu0 0
    %148 = vperm.xlu0 %147, %v92
    %v149 = vpop.permute.xlu0 %148
    %152 = vset.pattern.permute.xlu0 0
    %153 = vperm.xlu0 %152, %v93
    %v154 = vpop.permute.xlu0 %153
    %157 = vset.pattern.permute.xlu0 0
    %158 = vperm.xlu0 %157, %v94
    %v159 = vpop.permute.xlu0 %158
    %162 = vset.pattern.permute.xlu0 0
    %163 = vperm.xlu0 %162, %v95
    %v164 = vpop.permute.xlu0 %163
    %167 = vset.pattern.permute.xlu0 0
    %168 = vperm.xlu0 %167, %v96
    %v169 = vpop.permute.xlu0 %168
    %172 = vset.pattern.permute.xlu0 0
    %173 = vperm.xlu0 %172, %v97
    %v174 = vpop.permute.xlu0 %173
    %177 = vset.pattern.permute.xlu0 0
    %178 = vperm.xlu0 %177, %v98
    %v179 = vpop.permute.xlu0 %178
    %182 = vset.pattern.permute.xlu0 0
    %183 = vperm.xlu0 %182, %v99
    %v184 = vpop.permute.xlu0 %183
    %187 = vset.pattern.permute.xlu0 0
    %188 = vperm.xlu0 %187, %v100
    %v189 = vpop.permute.xlu0 %188
    %v209 = vunpack.c.l.b16 %v65
    %v210 = vunpack.c.l.b16 %v66
    %v211 = vunpack.c.l.b16 %v67
    %v212 = vunpack.c.l.b16 %v68
    %v213 = vunpack.c.l.b16 %v69
    %v214 = vunpack.c.l.b16 %v70
    %v215 = vunpack.c.l.b16 %v71
    %v216 = vunpack.c.l.b16 %v72
    %v217 = vunpack.c.l.b16 %v73
    %v218 = vunpack.c.l.b16 %v74
    %v219 = vunpack.c.l.b16 %v75
    %v220 = vunpack.c.l.b16 %v76
    %v221 = vunpack.c.l.b16 %v77
    %v222 = vunpack.c.l.b16 %v78
    %v223 = vunpack.c.l.b16 %v79
    %v224 = vunpack.c.l.b16 %v80
    %v225 = vunpack.c.l.b16 %v81
    %v226 = vunpack.c.l.b16 %v82
    %v227 = vpack.c.b16 %v210, %v209
    %v228 = vpack.c.b16 %v212, %v211
    %v229 = vpack.c.b16 %v214, %v213
    %v230 = vpack.c.b16 %v216, %v215
    %v231 = vpack.c.b16 %v218, %v217
    %v232 = vpack.c.b16 %v220, %v219
    %v233 = vpack.c.b16 %v222, %v221
    %v234 = vpack.c.b16 %v224, %v223
    %v235 = vpack.c.b16 %v226, %v225
    %245 = vmatpush.bf16.xpose.msra.mxu0 %v64
    %246 = vmatpush.bf16.xpose.msra.mxu0 %v63
    %247 = vmatpush.bf16.xpose.msra.mxu0 %v62
    %248 = vmatpush.bf16.xpose.msra.mxu0 %v61
    %249 = vmatpush.bf16.xpose.msra.mxu0 %v60
    %250 = vmatpush.bf16.xpose.msra.mxu0 %v59
    %251 = vmatpush.bf16.xpose.msra.mxu0 %v58
    %252 = vmatpush.bf16.xpose.msra.mxu0 %v57
    %253 = vmatmul.bf16.gmra.mxu0 %v227
    %v254 = vpop.f32.mrf.mxu0
    %v255 = vadd.f32 %v104, %v254
    %v256 = vpop.f32.mrf.mxu0
    %v257 = vadd.f32 %v109, %v256
    %258 = vmatmul.bf16.gmra.mxu0 %v228
    %v259 = vpop.f32.mrf.mxu0
    %v260 = vadd.f32 %v114, %v259
    %v261 = vpop.f32.mrf.mxu0
    %v262 = vadd.f32 %v119, %v261
    %263 = vmatmul.bf16.gmra.mxu0 %v229
    %v264 = vpop.f32.mrf.mxu0
    %v265 = vadd.f32 %v124, %v264
    %v266 = vpop.f32.mrf.mxu0
    %v267 = vadd.f32 %v129, %v266
    %268 = vmatmul.bf16.gmra.mxu0 %v230
    %v269 = vpop.f32.mrf.mxu0
    %v270 = vadd.f32 %v134, %v269
    %v271 = vpop.f32.mrf.mxu0
    %v272 = vadd.f32 %v139, %v271
    %273 = vmatmul.bf16.gmra.mxu0 %v231
    %v274 = vpop.f32.mrf.mxu0
    %v275 = vadd.f32 %v144, %v274
    %v276 = vpop.f32.mrf.mxu0
    %v277 = vadd.f32 %v149, %v276
    %278 = vmatmul.bf16.gmra.mxu0 %v232
    %v279 = vpop.f32.mrf.mxu0
    %v280 = vadd.f32 %v154, %v279
    %v281 = vpop.f32.mrf.mxu0
    %v282 = vadd.f32 %v159, %v281
    %283 = vmatmul.bf16.gmra.mxu0 %v233
    %v284 = vpop.f32.mrf.mxu0
    %v285 = vadd.f32 %v164, %v284
    %v286 = vpop.f32.mrf.mxu0
    %v287 = vadd.f32 %v169, %v286
    %288 = vmatmul.bf16.gmra.mxu0 %v234
    %v289 = vpop.f32.mrf.mxu0
    %v290 = vadd.f32 %v174, %v289
    %v291 = vpop.f32.mrf.mxu0
    %v292 = vadd.f32 %v179, %v291
    %293 = vmatmul.bf16.gmra.mxu0 %v235
    %v294 = vpop.f32.mrf.mxu0
    %v295 = vadd.f32 %v184, %v294
    %v296 = vpop.f32.mrf.mxu0
    %v297 = vadd.f32 %v189, %v296
    %298 = vdwg.mxu0
    %vm299 = vcmp.gt.f32.partialorder %v255, 0.0
    %vm300 = vcmp.gt.f32.partialorder %v257, 0.0
    %vm301 = vcmp.gt.f32.partialorder %v260, 0.0
    %vm302 = vcmp.gt.f32.partialorder %v262, 0.0
    %vm303 = vcmp.gt.f32.partialorder %v265, 0.0
    %vm304 = vcmp.gt.f32.partialorder %v267, 0.0
    %vm305 = vcmp.gt.f32.partialorder %v270, 0.0
    %vm306 = vcmp.gt.f32.partialorder %v272, 0.0
    %vm307 = vcmp.gt.f32.partialorder %v275, 0.0
    %vm308 = vcmp.gt.f32.partialorder %v277, 0.0
    %vm309 = vcmp.gt.f32.partialorder %v280, 0.0
    %vm310 = vcmp.gt.f32.partialorder %v282, 0.0
    %vm311 = vcmp.gt.f32.partialorder %v285, 0.0
    %vm312 = vcmp.gt.f32.partialorder %v287, 0.0
    %vm313 = vcmp.gt.f32.partialorder %v290, 0.0
    %vm314 = vcmp.gt.f32.partialorder %v292, 0.0
    %v315 = vmul.f32 %v255, 0.2
    %v316 = vmul.f32 %v257, 0.2
    %v317 = vmul.f32 %v260, 0.2
    %v318 = vmul.f32 %v262, 0.2
    %v319 = vmul.f32 %v265, 0.2
    %v320 = vmul.f32 %v267, 0.2
    %v321 = vmul.f32 %v270, 0.2
    %v322 = vmul.f32 %v272, 0.2
    %v323 = vmul.f32 %v275, 0.2
    %v324 = vmul.f32 %v277, 0.2
    %v325 = vmul.f32 %v280, 0.2
    %v326 = vmul.f32 %v282, 0.2
    %v327 = vmul.f32 %v285, 0.2
    %v328 = vmul.f32 %v287, 0.2
    %v329 = vmul.f32 %v290, 0.2
    %v330 = vmul.f32 %v292, 0.2
    %v331 = vsel %vm299, %v255, %v315
    %v332 = vsel %vm300, %v257, %v316
    %v333 = vsel %vm301, %v260, %v317
    %v334 = vsel %vm302, %v262, %v318
    %v335 = vsel %vm303, %v265, %v319
    %v336 = vsel %vm304, %v267, %v320
    %v337 = vsel %vm305, %v270, %v321
    %v338 = vsel %vm306, %v272, %v322
    %v339 = vsel %vm307, %v275, %v323
    %v340 = vsel %vm308, %v277, %v324
    %v341 = vsel %vm309, %v280, %v325
    %v342 = vsel %vm310, %v282, %v326
    %v343 = vsel %vm311, %v285, %v327
    %v344 = vsel %vm312, %v287, %v328
    %v345 = vsel %vm313, %v290, %v329
    %v346 = vsel %vm314, %v292, %v330
    %v347 = vld [vmem:[%s3] sm:$0x3]
    %v348 = vpack.c.bf16 %v332, %v331
    %v349 = vpack.c.bf16 %v334, %v333
    %v350 = vpack.c.bf16 %v336, %v335
    %v351 = vpack.c.bf16 %v338, %v337
    %v352 = vpack.c.bf16 %v340, %v339
    %v353 = vpack.c.bf16 %v342, %v341
    %v354 = vpack.c.bf16 %v344, %v343
    %v355 = vpack.c.bf16 %v346, %v345
    %v356 = vld [vmem:[%s4] sm:$0xf]
    %358 = vset.pattern.permute.xlu0 0
    %359 = vperm.xlu0 %358, %v356
    %v360 = vpop.permute.xlu0 %359
    %362 = vmatpush.bf16.msra.mxu0 %v355
    %363 = vmatpush.bf16.msra.mxu0 %v354
    %364 = vmatpush.bf16.msra.mxu0 %v353
    %365 = vmatpush.bf16.msra.mxu0 %v352
    %366 = vmatpush.bf16.msra.mxu0 %v351
    %367 = vmatpush.bf16.msra.mxu0 %v350
    %368 = vmatpush.bf16.msra.mxu0 %v349
    %369 = vmatpush.bf16.msra.mxu0 %v348
    %370 = vmatmul.bf16.gmra.mxu0 %v347
    %v371 = vpop.f32.mrf.mxu0
    %v372 = vadd.f32 %v360, %v371
    %v373 = vpop.f32.mrf.mxu0
    %374 = vdwg.mxu0
    %375 = vst [vmem:[#allocation5] sm:$0xf] %v372
    %376 = vst [vmem:[#allocation6] sm:$0xff] %v295
    %v377 = vmul.f32 %v297, 1.442695
    %v378 = vpow.pop %v377
    %379 = vst [vmem:[#allocation8] sm:$0xff] %v378
    // Predicated region
    $region26: #{tpu_custom_call.1} parent=1 // pred_check
      _
    $region27: #{tpu_custom_call.1} parent=1 // pred_check_branch
      %381 = sbr.rel (0) target = $region29
    $region28: #{tpu_custom_call.1} parent=1 // pred_region
      %383 = vsyncadd [#allocation4], 0
      %s385 = sshll.u32 [#allocation5], 4
      %s386 = int_to_ptr.vmem [resolvable:$true] %s385
      %s387 = sshll.u32 %s5, 4
      %s388 = int_to_ptr.hbm [resolvable:$true] %s387
      %390 = dma.vmem_to_hbm [thread:$0]  %s386, 64, %s388, [#allocation4]
    $region29: #{tpu_custom_call.1} parent=1 // pred_fallthru
      _
    // Predicated region
    $region30: #{tpu_custom_call.1} parent=1 // pred_check
      _
    $region31: #{tpu_custom_call.1} parent=1 // pred_check_branch
      %392 = sbr.rel (0) target = $region33
    $region32: #{tpu_custom_call.1} parent=1 // pred_region
      %394 = vsyncadd [#allocation7], 0
      %s396 = sshll.u32 [#allocation6], 4
      %s397 = int_to_ptr.vmem [resolvable:$true] %s396
      %s398 = sshll.u32 %s6, 4
      %s399 = int_to_ptr.hbm [resolvable:$true] %s398
      %401 = dma.vmem_to_hbm [thread:$0]  %s397, 128, %s399, [#allocation7]
    $region33: #{tpu_custom_call.1} parent=1 // pred_fallthru
      _
    // Predicated region
    $region34: #{tpu_custom_call.1} parent=1 // pred_check
      _
    $region35: #{tpu_custom_call.1} parent=1 // pred_check_branch
      %403 = sbr.rel (0) target = $region37
    $region36: #{tpu_custom_call.1} parent=1 // pred_region
      %405 = vsyncadd [#allocation7], 0
      %s407 = sshll.u32 [#allocation8], 4
      %s408 = int_to_ptr.vmem [resolvable:$true] %s407
      %s409 = sshll.u32 %s7, 4
      %s410 = int_to_ptr.hbm [resolvable:$true] %s409
      %412 = dma.vmem_to_hbm [thread:$0]  %s408, 128, %s410, [#allocation7]
    $region37: #{tpu_custom_call.1} parent=1 // pred_fallthru
      _
    // Predicated region
    $region38: #{tpu_custom_call.1} parent=1 // pred_check
      _
    $region39: #{tpu_custom_call.1} parent=1 // pred_check_branch
      %414 = sbr.rel (0) target = $region41
    $region40: #{tpu_custom_call.1} parent=1 // pred_region
      %416 = dma.done [#allocation4], 64
    $region41: #{tpu_custom_call.1} parent=1 // pred_fallthru
      _
    // Predicated region
    $region42: #{tpu_custom_call.1} parent=1 // pred_check
      _
    $region43: #{tpu_custom_call.1} parent=1 // pred_check_branch
      %418 = sbr.rel (0) target = $region45
    $region44: #{tpu_custom_call.1} parent=1 // pred_region
      %420 = dma.done [#allocation7], 128
    $region45: #{tpu_custom_call.1} parent=1 // pred_fallthru
      _
    // Predicated region
    $region46: #{tpu_custom_call.1} parent=1 // pred_check
      _
    $region47: #{tpu_custom_call.1} parent=1 // pred_check_branch
      %422 = sbr.rel (0) target = $region49
    $region48: #{tpu_custom_call.1} parent=1 // pred_region
      %424 = dma.done [#allocation7], 128
    $region49: #{tpu_custom_call.1} parent=1 // pred_fallthru
      _
    %425 = vsyncpa [#allocation3], 1
    %426 = vsyncpa [#allocation4], 1
    %427 = vsyncpa [#allocation7], 1

</llo_original>
